<compile_context>
chip_gen: v7x
topology: tpu7x:2x2x1
jax: 0.10.0
libtpu: 0.0.40
codegen_flags: <defaults>
</compile_context>

<pallas_src>
import math

import jax
import jax.numpy as jnp
import numpy as np
from jax.experimental import pallas as pl
from jax.experimental.pallas import tpu as pltpu

_LANE = 128  # vreg lane width


# ------------------------------ Pallas kernel --------------------------------
def _copy_kernel(x_ref, o_ref):
    # Pure data movement: Unflatten has no compute.  The grid/BlockSpec
    # machinery provides double-buffered HBM<->VMEM DMA around this store.
    o_ref[...] = x_ref[...]


# ------------------------------ helpers --------------------------------------
def _resolve_size(size, total):
    """Resolve a single -1 entry exactly like torch.Tensor.view."""
    size = tuple(int(s) for s in size)
    if size.count(-1) > 1:
        raise ValueError("only one dimension can be inferred")
    if -1 in size:
        idx = size.index(-1)
        rest = 1
        for j, s in enumerate(size):
            if j != idx:
                rest *= s
        if rest == 0 or total % rest != 0:
            raise ValueError(f"shape {size} is invalid for input of size {total}")
        size = size[:idx] + (total // rest,) + size[idx + 1:]
    if math.prod(size) != total:
        raise ValueError(f"shape {size} is invalid for input of size {total}")
    return size


def _largest_divisor_le(n, cap):
    for d in range(min(cap, n), 0, -1):
        if n % d == 0:
            return d
    return 1


def _device_block_config():
    """(block_bytes, vmem_limit_bytes) tuned per TPU generation."""
    try:
        kind = jax.devices()[0].device_kind.lower()
    except Exception:  # pragma: no cover - defensive
        kind = ""
    if ("v6" in kind) or ("v7" in kind):
        # Big blocks to amortize per-step overhead on fast-HBM parts.
        # in+out double buffers = 4 x 8 MiB = 32 MiB < 48 MiB scoped limit
        # (< 64 MiB v7x physical VMEM, << 128 MiB v6e).
        return 8 << 20, 48 << 20
    # v5e / unknown: 4 x 2 MiB = 8 MiB fits the 16 MiB scoped-VMEM default.
    return 2 << 20, None


# ------------------------------ wrapper ---------------------------------------
def unflatten(x, size, *, block_bytes=None, materialize=True):
    """Pallas equivalent of torch `x.view(*size)` (row-major reinterpretation).

    materialize=False is the true fast path: a metadata-only reshape
    (zero HBM traffic).  materialize=True runs the standalone Pallas copy.
    """
    total = int(x.size)
    out_shape = _resolve_size(size, total)

    if not materialize or total == 0:
        return jnp.reshape(x, out_shape)

    default_bb, vmem_limit = _device_block_config()
    if block_bytes is None:
        block_bytes = default_bb

    itemsize = jnp.dtype(x.dtype).itemsize
    # dtype-aware minimum row multiple: 8 (f32) / 16 (bf16,f16) / 32 (int8,fp8)
    sub_mult = 8 * max(1, 4 // itemsize)

    # Lane-dense working layout: (rows, 128) when possible, otherwise the
    # largest divisor of `total` (<= 512) as the full last dim (edge case;
    # the scene-generation decoder's C*H*W is always 128-divisible).
    if total % _LANE == 0:
        lanes = _LANE
    else:
        lanes = _largest_divisor_le(total, 512)
    rows = total // lanes

    x2d = x.reshape(rows, lanes)  # metadata-only (contiguous)

    # Row tile sized in bytes; ragged last block is masked by Pallas, so no
    # pre-pad / post-slice HBM passes are needed.
    tr_target = max(1, block_bytes // (lanes * itemsize))
    if tr_target >= rows:
        tr = rows                                   # single block, full extent
    else:
        tr = max(sub_mult, (tr_target // sub_mult) * sub_mult)
        tr = min(tr, rows)
    grid_r = pl.cdiv(rows, tr)

    out2d = pl.pallas_call(
        _copy_kernel,
        out_shape=jax.ShapeDtypeStruct((rows, lanes), x.dtype),
        grid=(grid_r,),
        in_specs=[pl.BlockSpec((tr, lanes), lambda i: (i, 0))],
        out_specs=pl.BlockSpec((tr, lanes), lambda i: (i, 0)),
        compiler_params=pltpu.CompilerParams(
            dimension_semantics=("parallel",),
            vmem_limit_bytes=vmem_limit),
        cost_estimate=pl.CostEstimate(
            flops=0, transcendentals=0,
            bytes_accessed=2 * total * itemsize),
    )(x2d)

    return out2d.reshape(out_shape)


class Unflatten:
    """Mirror of the PyTorch module, backed by the Pallas copy kernel."""

    def __init__(self, size):
        self.size = tuple(size)

    def __call__(self, x):
        return unflatten(x, self.size)

    def __repr__(self):
        return "Unflatten(%s)" % ", ".join("%d" % d for d in self.size)


# ------------------------------ test / demo -----------------------------------
if __name__ == "__main__":
    key = jax.random.PRNGKey(0)
    k1, k2, k3, k4 = jax.random.split(key, 4)

    # Case 1: typical decoder-style use: (N, C*H*W) -> (N, C, H, W) with -1.
    N, C, H, W = 2, 4, 16, 16
    x1 = jax.random.normal(k1, (N, C * H * W), jnp.float32)
    y1 = jax.block_until_ready(unflatten(x1, (-1, C, H, W)))
    assert y1.shape == (N, C, H, W), y1.shape
    np.testing.assert_array_equal(
        np.asarray(y1), np.asarray(jnp.reshape(x1, (N, C, H, W))))

    # Case 2: non-lane-aligned element count (105 elems) -> full-array block.
    x2 = jax.random.normal(k2, (3, 7, 5), jnp.float32)
    y2 = jax.block_until_ready(unflatten(x2, (21, 5)))
    np.testing.assert_array_equal(
        np.asarray(y2), np.asarray(jnp.reshape(x2, (21, 5))))

    # Case 3: multi-step grid with a ragged (partial) last block — exercises
    # the no-pad / no-slice path (144 rows, 32-row tiles -> grid=5, tail=16).
    x3 = jax.random.normal(k3, (2, 72, 128), jnp.float32)
    y3 = jax.block_until_ready(unflatten(x3, (2, 9216), block_bytes=16 << 10))
    np.testing.assert_array_equal(
        np.asarray(y3), np.asarray(jnp.reshape(x3, (2, 9216))))

    # Case 4: bf16 — dtype-aware sublane rounding keeps tiles multiples of
    # (16, 128); also hits a partial last block (160 rows, 64-row tiles).
    x4 = jax.random.normal(k4, (2, 80, 128), jnp.float32).astype(jnp.bfloat16)
    y4 = jax.block_until_ready(unflatten(x4, (-1, 128), block_bytes=16 << 10))
    np.testing.assert_array_equal(
        np.asarray(y4, dtype=np.float32),
        np.asarray(jnp.reshape(x4, (160, 128)), dtype=np.float32))

    # Fast path (metadata-only reshape, no kernel) stays available.
    y1_fast = jax.block_until_ready(unflatten(x1, (-1, C, H, W), materialize=False))
    np.testing.assert_array_equal(np.asarray(y1_fast), np.asarray(y1))

    print("KERNEL_OK")
</pallas_src>

<mosaic_0001>
module attributes {stable_mosaic.version = 11 : i64} {
  func.func @_copy_kernel(%arg0: i32, %arg1: memref<16x128xf32, #tpu.memory_space<vmem>>, %arg2: memref<16x128xf32, #tpu.memory_space<vmem>>) attributes {dimension_semantics = [#tpu.dimension_semantics<parallel>], iteration_bounds = array<i64: 1>, scalar_prefetch = 0 : i64, scratch_operands = 0 : i64, tpu.core_type = #tpu.core_type<tc>, window_params = [{transform_indices = @transform_0, window_bounds = array<i64: 16, 128>}, {transform_indices = @transform_1, window_bounds = array<i64: 16, 128>}]} {
    %c0 = arith.constant 0 : index
    %c0_0 = arith.constant 0 : index
    %0 = vector.load %arg1[%c0, %c0_0] : memref<16x128xf32, #tpu.memory_space<vmem>>, vector<16x128xf32>
    %c0_1 = arith.constant 0 : index
    %c0_2 = arith.constant 0 : index
    %1 = vector.load %arg2[%c0_1, %c0_2] : memref<16x128xf32, #tpu.memory_space<vmem>>, vector<16x128xf32>
    tpu.vector_store %arg2[%c0_1, %c0_2], %0 {strides = array<i32>} : memref<16x128xf32, #tpu.memory_space<vmem>>, vector<16x128xf32>,
    return
  }
  func.func @transform_0(%arg0: i32) -> (i32, i32) {
    %c0_i32 = arith.constant 0 : i32
    %c0_i32_0 = arith.constant 0 : i32
    return %arg0, %c0_i32 : i32, i32
  }
  func.func @transform_1(%arg0: i32) -> (i32, i32) {
    %c0_i32 = arith.constant 0 : i32
    %c0_i32_0 = arith.constant 0 : i32
    return %arg0, %c0_i32 : i32, i32
  }
}

</mosaic_0001>

<llo_original>
// kernel: tpu_custom_call.1
$region0: #{tpu_custom_call.1}
  #allocation0 [shape = 'u32[]', space=smem, size = 0x4, offset = 0x4, fixed_abs, tag = 'smem constant byte address 0x4 - core index']
  #allocation1 [shape = 'u32[144,128]{1,0:T(1,128)}', space=vmem, size = 0x12000, scoped, tag = 'internal scratch']
  %s0 = inlined_call_operand.hbm [shape: f32[16,128], index: 0, kind: input, shape index: {}]
  %s1 = inlined_call_operand.hbm [shape: f32[16,128], index: 1, kind: output, shape index: {}]
  %s2 = sld [smem:[#allocation0]]
  $region18: #{tpu_custom_call.1} parent=0
    _
  %s4 = ssub.s32 1, %s2
  %s5 = scalar_select 0, %s4, %s2
  $region1: #{tpu_custom_call.1} parent=0
    #allocation2 [shape = 'u8[8192]{0}', space=vmem, size = 0x2000, scoped, tag = 'input window, operand 0, single buffered']
    #allocation3 [shape = 's32[1]{0}', space=sflag, size = 0x4, scoped, tag = 'scoped memory for tpu_custom_call.1']
    #allocation4 [shape = 's32[1]{0}', space=sflag, size = 0x4, scoped, tag = 'scoped memory for tpu_custom_call.1']
    #allocation5 [shape = 'u8[8192]{0}', space=vmem, size = 0x2000, scoped, tag = 'output window, operand 0, single buffered']
    %6 = vsyncpa [#allocation3], 0
    %7 = vsyncpa [#allocation4], 0
    // Predicated region
    $region2: #{tpu_custom_call.1} parent=1 // pred_check
      _
    $region3: #{tpu_custom_call.1} parent=1 // pred_check_branch
      %9 = sbr.rel (0) target = $region5
    $region4: #{tpu_custom_call.1} parent=1 // pred_region
      %s11 = ssub.s32 256, 256
      %12 = vsyncadd [#allocation3], %s11
      %s13 = sshll.u32 [#allocation2], 4
      %s14 = int_to_ptr.vmem [resolvable:$true] %s13
      %19 = dma.hbm_to_vmem [thread:$0]  %s0, 256, %s14, [#allocation3], 128, 128, 8
    $region5: #{tpu_custom_call.1} parent=1 // pred_fallthru
      _
    // Predicated region
    $region6: #{tpu_custom_call.1} parent=1 // pred_check
      _
    $region7: #{tpu_custom_call.1} parent=1 // pred_check_branch
      %21 = sbr.rel (0) target = $region9
    $region8: #{tpu_custom_call.1} parent=1 // pred_region
      %22 = dma.done [#allocation3], 256
    $region9: #{tpu_custom_call.1} parent=1 // pred_fallthru
      _
    %v23 = vld [vmem:[#allocation2] sm:$0xff]
    %v24 = vld [vmem:[#allocation2 + $0x8] sm:$0xff]
    %25 = vst [vmem:[#allocation5] sm:$0xff] %v23
    %26 = vst [vmem:[#allocation5 + $0x8] sm:$0xff] %v24
    // Predicated region
    $region10: #{tpu_custom_call.1} parent=1 // pred_check
      _
    $region11: #{tpu_custom_call.1} parent=1 // pred_check_branch
      %28 = sbr.rel (0) target = $region13
    $region12: #{tpu_custom_call.1} parent=1 // pred_region
      %s30 = ssub.s32 256, 256
      %31 = vsyncadd [#allocation4], %s30
      %s32 = sshll.u32 [#allocation5], 4
      %s33 = int_to_ptr.vmem [resolvable:$true] %s32
      %38 = dma.vmem_to_hbm [thread:$0]  %s33, 256, %s1, [#allocation4], 128, 128, 8
    $region13: #{tpu_custom_call.1} parent=1 // pred_fallthru
      _
    // Predicated region
    $region14: #{tpu_custom_call.1} parent=1 // pred_check
      _
    $region15: #{tpu_custom_call.1} parent=1 // pred_check_branch
      %40 = sbr.rel (0) target = $region17
    $region16: #{tpu_custom_call.1} parent=1 // pred_region
      %41 = dma.done [#allocation4], 256
    $region17: #{tpu_custom_call.1} parent=1 // pred_fallthru
      _
    %42 = vsyncpa [#allocation3], 1
    %43 = vsyncpa [#allocation4], 1

</llo_original>
